<compile_context>
chip_gen: v6e
topology: v6e:2x2x1
jax: 0.10.0
libtpu: 0.0.40
codegen_flags: <defaults>
</compile_context>

<pallas_src>
import jax
import jax.numpy as jnp
from jax.experimental import pallas as pl
from jax.experimental.pallas import tpu as pltpu

_MIB = 1 << 20


# -------------------------- TPU generation probing ---------------------------

def _round_up(a, m):
    return ((a + m - 1) // m) * m


def _vmem_plan():
    """Best-effort generation probe -> (tile_budget_bytes, vmem_limit_bytes, min_grid_steps)."""
    kind = ""
    try:
        kind = jax.devices()[0].device_kind.lower()
    except Exception:
        pass
    phys = None
    try:  # trace-time HW query; optional
        phys = getattr(pltpu.get_tpu_info(), "vmem_capacity_bytes", None)
    except Exception:
        phys = None

    if "v5 lite" in kind or "v5e" in kind or "v5lite" in kind:
        # 128 MiB physical but only 16 MiB scoped by default -> raise the limit.
        budget, limit, min_steps = 12 * _MIB, 64 * _MIB, 1
    elif "v6" in kind:
        # 128 MiB physical.
        budget, limit, min_steps = 40 * _MIB, 100 * _MIB, 1
    elif "v7" in kind or "7x" in kind:
        # Only 64 MiB physical, 2 TensorCores per chip.
        budget, limit, min_steps = 36 * _MIB, 48 * _MIB, 2
    else:  # unknown / other: conservative numbers that fit every generation
        budget, limit, min_steps = 12 * _MIB, 48 * _MIB, 1

    if phys:
        limit = min(limit, (int(phys) * 3) // 4)
        budget = min(budget, max(8 * _MIB, limit - 8 * _MIB))
    return int(budget), int(limit), int(min_steps)


def _choose_tiling(B, C, HW, x_isize, o_isize, per_b_bytes, shared_bytes,
                   budget, min_steps):
    """Pick (b_blk, t_hw, hw_pad, n_hw): batch block, lane tile (multiple of 128),
    padded lane extent (multiple of t_hw), number of lane tiles."""
    hw128 = max(128, _round_up(HW, 128))

    def t_for(b_blk):
        per_lane = 2 * b_blk * C * (x_isize + o_isize)     # x + out, double-buffered
        avail = budget - shared_bytes - 2 * b_blk * per_b_bytes
        cap = avail // per_lane if avail > 0 else 0
        cap = max(128, (cap // 128) * 128)
        return min(hw128, cap)

    # Prefer folding the whole (padded) HW into one tile and batching b into the
    # step (amortizes per-step overhead when HW is small); otherwise stream HW
    # tiles per single batch element.
    b_blk = 1
    for cand in range(B, 0, -1):
        if B % cand == 0 and t_for(cand) >= hw128:
            b_blk = cand
            break
    t_hw = t_for(b_blk)
    hw_pad = _round_up(HW, t_hw)
    n_hw = hw_pad // t_hw

    # v7x: make sure both TensorCores get at least one parallel grid step.
    if (B // b_blk) * n_hw < min_steps:
        if b_blk > 1:
            for cand in range(b_blk - 1, 0, -1):
                if B % cand == 0:
                    b_blk = cand
                    break
        elif hw_pad >= 2 * 128:
            t_hw = max(128, ((hw_pad // 2) // 128) * 128)
        hw_pad = _round_up(HW, t_hw)
        n_hw = hw_pad // t_hw
    return b_blk, t_hw, hw_pad, n_hw


# --------------------------------- kernels -----------------------------------

def _make_vpu_kernel(b_blk, c):
    """Small-C path: unrolled VPU channel mix; sigma pre-folded into the weight."""
    def kernel(x_ref, w_ref, emb_ref, o_ref):
        # x_ref:   (b_blk, C, t)  activations, HW on lanes
        # w_ref:   (b_blk, C, C)  sigma_b * wc^T  (f32)
        # emb_ref: (b_blk, C, 1)  CFG-combined per-batch bias (f32)
        for b in range(b_blk):               # static unroll over the batch block
            x = x_ref[b].astype(jnp.float32)               # [C, t]
            w = w_ref[b]                                    # [C, C]
            base = w[:, 0:1] * x[0:1, :]                    # broadcast FMA on VPU
            for k in range(1, c):
                base = base + w[:, k:k + 1] * x[k:k + 1, :]
            o_ref[b] = (base + emb_ref[b]).astype(o_ref.dtype)
    return kernel


def _make_mxu_kernel(b_blk):
    """General-C path: channel mix on the MXU, sigma from SMEM, f32 accumulation."""
    def kernel(sigma_ref, x_ref, wct_ref, emb_ref, o_ref):
        w = wct_ref[...]                                    # [C, C], activation dtype
        for b in range(b_blk):
            base = jnp.dot(w, x_ref[b], preferred_element_type=jnp.float32)
            o_ref[b] = (base * sigma_ref[b, 0] + emb_ref[b]).astype(o_ref.dtype)
    return kernel


# --------------------------------- wrapper ------------------------------------

def cfg_denoiser(x, sigma, uncond, cond, cond_scale, wc, wd):
    """x: [B,C,H,W], sigma: [B], uncond/cond: [B,S,D], cond_scale: scalar,
       wc: [C,C] (1x1-conv channel mix), wd: [D,C] (conditioning projection)."""
    B, C, H, W = x.shape
    HW = H * W
    x_isize = x.dtype.itemsize

    budget, vmem_limit, min_steps = _vmem_plan()

    # Conditioning path (tiny O(B*S*D)) hoisted to XLA and CFG-collapsed into a
    # single per-batch [C] bias.
    cs = jnp.asarray(cond_scale, jnp.float32)
    u_emb = jnp.mean(uncond.astype(jnp.float32), axis=1) @ wd.astype(jnp.float32)
    c_emb = jnp.mean(cond.astype(jnp.float32), axis=1) @ wd.astype(jnp.float32)
    emb3 = (u_emb + (c_emb - u_emb) * cs).reshape(B, C, 1)          # [B,C,1] f32

    wct = jnp.swapaxes(wc, 0, 1)                 # wc^T so the kernel output is [C, HW]

    # Tiny C -> VPU FMA path (MXU would be ~2% utilized); otherwise MXU path.
    small_c = C * max(x_isize, 2) <= 32          # C<=8 f32 / C<=16 bf16

    single_buf = False
    if small_c:
        per_b_bytes = C * C * 4 + C * 4          # sigma-folded weight + bias, per buffer
        shared_bytes = 0
    else:
        wct_m = wct.astype(x.dtype)              # pin operand dtypes (native MXU on v5e)
        wct_bytes = C * C * wct_m.dtype.itemsize
        single_buf = wct_bytes >= (128 << 10)    # single-buffer only when it saves real VMEM
        per_b_bytes = C * 4                      # bias per buffer (SMEM sigma negligible)
        shared_bytes = wct_bytes * (1 if single_buf else 2)

    b_blk, t_hw, hw_pad, n_hw = _choose_tiling(
        B, C, HW, x_isize, x_isize, per_b_bytes, shared_bytes, budget, min_steps)
    grid = (B // b_blk, n_hw)

    # Free reshape (NCHW is already [B,C,HW]-contiguous); pad HW up to a multiple
    # of the lane tile so every block is full and every store is unmasked.
    x_flat = x.reshape(B, C, HW)
    if hw_pad != HW:
        x_flat = jnp.pad(x_flat, ((0, 0), (0, 0), (0, hw_pad - HW)))

    cparams = pltpu.CompilerParams(
        dimension_semantics=("parallel", "parallel"),
        vmem_limit_bytes=vmem_limit)
    out_shape = jax.ShapeDtypeStruct((B, C, hw_pad), x.dtype)
    x_in_spec = pl.BlockSpec((b_blk, C, t_hw), lambda bb, t: (bb, 0, t))
    x_out_spec = pl.BlockSpec((b_blk, C, t_hw), lambda bb, t: (bb, 0, t))
    emb_spec = pl.BlockSpec((b_blk, C, 1), lambda bb, t: (bb, 0, 0))
    # (emb is only C*4*b_blk bytes; not worth single-buffering even though it only
    #  changes with the batch block.)

    if small_c:
        # Fold sigma into a per-batch weight: out_b = (sigma_b * wc^T) @ x_b + emb_b.
        wb = wct.astype(jnp.float32)[None] * sigma.astype(jnp.float32).reshape(B, 1, 1)
        out_flat = pl.pallas_call(
            _make_vpu_kernel(b_blk, C),
            out_shape=out_shape,
            grid_spec=pltpu.PrefetchScalarGridSpec(
                num_scalar_prefetch=0,
                grid=grid,
                in_specs=[x_in_spec,
                          pl.BlockSpec((b_blk, C, C), lambda bb, t: (bb, 0, 0)),
                          emb_spec],
                out_specs=x_out_spec),
            compiler_params=cparams,
        )(x_flat, wb, emb3)
    else:
        sigma2 = sigma.astype(jnp.float32).reshape(B, 1)

        def run(use_single_buffer):
            w_kwargs = ({"pipeline_mode": pl.Buffered(buffer_count=1)}
                        if use_single_buffer else {})
            return pl.pallas_call(
                _make_mxu_kernel(b_blk),
                out_shape=out_shape,
                grid_spec=pltpu.PrefetchScalarGridSpec(
                    num_scalar_prefetch=0,
                    grid=grid,
                    in_specs=[
                        pl.BlockSpec((b_blk, 1), lambda bb, t: (bb, 0),
                                     memory_space=pltpu.SMEM),
                        x_in_spec,
                        pl.BlockSpec((C, C), lambda bb, t: (0, 0), **w_kwargs),
                        emb_spec],
                    out_specs=x_out_spec),
                compiler_params=cparams,
            )(sigma2, x_flat, wct_m, emb3)

        if single_buf:
            try:
                out_flat = run(True)
            except Exception:
                # Graceful fallback if this JAX build rejects Buffered(1).
                out_flat = run(False)
        else:
            out_flat = run(False)

    if hw_pad != HW:
        out_flat = out_flat[:, :, :HW]
    return out_flat.reshape(B, C, H, W)


# ----------------- pure-JAX reference (mirrors the torch cat/chunk) -----------

def _inner_model_ref(x, sigma, cond, wc, wd):
    B, C, H, W = x.shape
    xf = jnp.transpose(x, (0, 2, 3, 1)).reshape(B, H * W, C).astype(jnp.float32)
    base = jnp.einsum('bpc,cd->bpd', xf, wc.astype(jnp.float32),
                      precision=jax.lax.Precision.HIGHEST)
    base = base * sigma.astype(jnp.float32)[:, None, None]
    emb = jnp.mean(cond.astype(jnp.float32), axis=1) @ wd.astype(jnp.float32)
    out = base + emb[:, None, :]
    return out.reshape(B, H, W, C).transpose(0, 3, 1, 2)


def cfg_denoiser_ref(x, sigma, uncond, cond, cond_scale, wc, wd):
    x_in = jnp.concatenate([x] * 2)
    sigma_in = jnp.concatenate([sigma] * 2)
    cond_in = jnp.concatenate([uncond, cond])
    out = _inner_model_ref(x_in, sigma_in, cond_in, wc, wd)
    u, c = jnp.split(out, 2)
    return (u + (c - u) * cond_scale).astype(x.dtype)


# ----------------------------------- tests ------------------------------------

def _run_case(key, B, C, H, W, S, D, atol, rtol, tag):
    k_x, k_s, k_u, k_c, k_wc, k_wd = jax.random.split(key, 6)
    x = jax.random.normal(k_x, (B, C, H, W), dtype=jnp.float32)
    sigma = jax.random.uniform(k_s, (B,), dtype=jnp.float32) + 0.5
    uncond = jax.random.normal(k_u, (B, S, D), dtype=jnp.float32)
    cond = jax.random.normal(k_c, (B, S, D), dtype=jnp.float32)
    cond_scale = 7.5
    w_scale = 0.1 if C <= 8 else 1.0 / float(C) ** 0.5
    wc = jax.random.normal(k_wc, (C, C), dtype=jnp.float32) * w_scale
    wd = jax.random.normal(k_wd, (D, C), dtype=jnp.float32) * 0.1

    out = jax.block_until_ready(
        cfg_denoiser(x, sigma, uncond, cond, cond_scale, wc, wd))
    ref = cfg_denoiser_ref(x, sigma, uncond, cond, cond_scale, wc, wd)
    assert out.shape == (B, C, H, W), tag
    assert jnp.allclose(out.astype(jnp.float32), ref.astype(jnp.float32),
                        atol=atol, rtol=rtol), f"mismatch vs reference ({tag})"


if __name__ == "__main__":
    key = jax.random.PRNGKey(0)
    k1, k2 = jax.random.split(key)
    # Module demo shapes: small-C VPU path, batch-blocked single grid step.
    _run_case(k1, B=2, C=4, H=16, W=16, S=8, D=32,
              atol=2e-4, rtol=2e-4, tag="small-C VPU path")
    # Larger-C smoke test: MXU path, HW padded 576 -> 640 lanes, weight block
    # single-buffered (loose tolerance: MXU vs HIGHEST-precision XLA reference).
    _run_case(k2, B=1, C=256, H=24, W=24, S=8, D=32,
              atol=2e-2, rtol=2e-2, tag="large-C MXU path")
    print("KERNEL_OK")
</pallas_src>

<mosaic_0001>
module attributes {stable_mosaic.version = 11 : i64} {
  func.func @kernel(%arg0: i32, %arg1: i32, %arg2: memref<2x4x256xf32, #tpu.memory_space<vmem>>, %arg3: memref<2x4x4xf32, #tpu.memory_space<vmem>>, %arg4: memref<2x4x1xf32, #tpu.memory_space<vmem>>, %arg5: memref<2x4x256xf32, #tpu.memory_space<vmem>>) attributes {dimension_semantics = [#tpu.dimension_semantics<parallel>, #tpu.dimension_semantics<parallel>], iteration_bounds = array<i64: 1, 1>, scalar_prefetch = 0 : i64, scratch_operands = 0 : i64, tpu.core_type = #tpu.core_type<tc>, window_params = [{transform_indices = @transform_0, window_bounds = array<i64: 2, 4, 256>}, {transform_indices = @transform_1, window_bounds = array<i64: 2, 4, 4>}, {transform_indices = @transform_2, window_bounds = array<i64: 2, 4, 1>}, {transform_indices = @transform_3, window_bounds = array<i64: 2, 4, 256>}]} {
    %c0 = arith.constant 0 : index
    %c0_0 = arith.constant 0 : index
    %c0_1 = arith.constant 0 : index
    %0 = vector.load %arg2[%c0, %c0_0, %c0_1] : memref<2x4x256xf32, #tpu.memory_space<vmem>>, vector<1x4x256xf32>
    %1 = vector.shape_cast %0 : vector<1x4x256xf32> to vector<4x256xf32>
    %c0_2 = arith.constant 0 : index
    %c0_3 = arith.constant 0 : index
    %c0_4 = arith.constant 0 : index
    %2 = vector.load %arg3[%c0_2, %c0_3, %c0_4] : memref<2x4x4xf32, #tpu.memory_space<vmem>>, vector<1x4x4xf32>
    %3 = vector.shape_cast %2 : vector<1x4x4xf32> to vector<4x4xf32>
    %4 = vector.extract_strided_slice %3 {offsets = [0, 0], sizes = [4, 1], strides = [1, 1]} : vector<4x4xf32> to vector<4x1xf32>
    %5 = vector.extract_strided_slice %1 {offsets = [0, 0], sizes = [1, 256], strides = [1, 1]} : vector<4x256xf32> to vector<1x256xf32>
    %6 = vector.broadcast %4 : vector<4x1xf32> to vector<4x256xf32>
    %7 = vector.broadcast %5 : vector<1x256xf32> to vector<4x256xf32>
    %8 = arith.mulf %6, %7 : vector<4x256xf32>
    %9 = vector.extract_strided_slice %3 {offsets = [0, 1], sizes = [4, 1], strides = [1, 1]} : vector<4x4xf32> to vector<4x1xf32>
    %10 = vector.extract_strided_slice %1 {offsets = [1, 0], sizes = [1, 256], strides = [1, 1]} : vector<4x256xf32> to vector<1x256xf32>
    %11 = vector.broadcast %9 : vector<4x1xf32> to vector<4x256xf32>
    %12 = vector.broadcast %10 : vector<1x256xf32> to vector<4x256xf32>
    %13 = arith.mulf %11, %12 : vector<4x256xf32>
    %14 = arith.addf %8, %13 : vector<4x256xf32>
    %15 = vector.extract_strided_slice %3 {offsets = [0, 2], sizes = [4, 1], strides = [1, 1]} : vector<4x4xf32> to vector<4x1xf32>
    %16 = vector.extract_strided_slice %1 {offsets = [2, 0], sizes = [1, 256], strides = [1, 1]} : vector<4x256xf32> to vector<1x256xf32>
    %17 = vector.broadcast %15 : vector<4x1xf32> to vector<4x256xf32>
    %18 = vector.broadcast %16 : vector<1x256xf32> to vector<4x256xf32>
    %19 = arith.mulf %17, %18 : vector<4x256xf32>
    %20 = arith.addf %14, %19 : vector<4x256xf32>
    %21 = vector.extract_strided_slice %3 {offsets = [0, 3], sizes = [4, 1], strides = [1, 1]} : vector<4x4xf32> to vector<4x1xf32>
    %22 = vector.extract_strided_slice %1 {offsets = [3, 0], sizes = [1, 256], strides = [1, 1]} : vector<4x256xf32> to vector<1x256xf32>
    %23 = vector.broadcast %21 : vector<4x1xf32> to vector<4x256xf32>
    %24 = vector.broadcast %22 : vector<1x256xf32> to vector<4x256xf32>
    %25 = arith.mulf %23, %24 : vector<4x256xf32>
    %26 = arith.addf %20, %25 : vector<4x256xf32>
    %c0_5 = arith.constant 0 : index
    %c0_6 = arith.constant 0 : index
    %c0_7 = arith.constant 0 : index
    %27 = vector.load %arg4[%c0_5, %c0_6, %c0_7] : memref<2x4x1xf32, #tpu.memory_space<vmem>>, vector<1x4x1xf32>
    %28 = vector.shape_cast %27 : vector<1x4x1xf32> to vector<4x1xf32>
    %29 = vector.broadcast %28 : vector<4x1xf32> to vector<4x256xf32>
    %30 = arith.addf %26, %29 : vector<4x256xf32>
    %c0_8 = arith.constant 0 : index
    %c0_9 = arith.constant 0 : index
    %c0_10 = arith.constant 0 : index
    %31 = vector.load %arg5[%c0_8, %c0_9, %c0_10] : memref<2x4x256xf32, #tpu.memory_space<vmem>>, vector<1x4x256xf32>
    %32 = vector.shape_cast %31 : vector<1x4x256xf32> to vector<4x256xf32>
    %33 = vector.shape_cast %30 : vector<4x256xf32> to vector<1x4x256xf32>
    tpu.vector_store %arg5[%c0_8, %c0_9, %c0_10], %33 {strides = array<i32>} : memref<2x4x256xf32, #tpu.memory_space<vmem>>, vector<1x4x256xf32>,
    %c1 = arith.constant 1 : index
    %c0_11 = arith.constant 0 : index
    %c0_12 = arith.constant 0 : index
    %34 = vector.load %arg2[%c1, %c0_11, %c0_12] : memref<2x4x256xf32, #tpu.memory_space<vmem>>, vector<1x4x256xf32>
    %35 = vector.shape_cast %34 : vector<1x4x256xf32> to vector<4x256xf32>
    %c1_13 = arith.constant 1 : index
    %c0_14 = arith.constant 0 : index
    %c0_15 = arith.constant 0 : index
    %36 = vector.load %arg3[%c1_13, %c0_14, %c0_15] : memref<2x4x4xf32, #tpu.memory_space<vmem>>, vector<1x4x4xf32>
    %37 = vector.shape_cast %36 : vector<1x4x4xf32> to vector<4x4xf32>
    %38 = vector.extract_strided_slice %37 {offsets = [0, 0], sizes = [4, 1], strides = [1, 1]} : vector<4x4xf32> to vector<4x1xf32>
    %39 = vector.extract_strided_slice %35 {offsets = [0, 0], sizes = [1, 256], strides = [1, 1]} : vector<4x256xf32> to vector<1x256xf32>
    %40 = vector.broadcast %38 : vector<4x1xf32> to vector<4x256xf32>
    %41 = vector.broadcast %39 : vector<1x256xf32> to vector<4x256xf32>
    %42 = arith.mulf %40, %41 : vector<4x256xf32>
    %43 = vector.extract_strided_slice %37 {offsets = [0, 1], sizes = [4, 1], strides = [1, 1]} : vector<4x4xf32> to vector<4x1xf32>
    %44 = vector.extract_strided_slice %35 {offsets = [1, 0], sizes = [1, 256], strides = [1, 1]} : vector<4x256xf32> to vector<1x256xf32>
    %45 = vector.broadcast %43 : vector<4x1xf32> to vector<4x256xf32>
    %46 = vector.broadcast %44 : vector<1x256xf32> to vector<4x256xf32>
    %47 = arith.mulf %45, %46 : vector<4x256xf32>
    %48 = arith.addf %42, %47 : vector<4x256xf32>
    %49 = vector.extract_strided_slice %37 {offsets = [0, 2], sizes = [4, 1], strides = [1, 1]} : vector<4x4xf32> to vector<4x1xf32>
    %50 = vector.extract_strided_slice %35 {offsets = [2, 0], sizes = [1, 256], strides = [1, 1]} : vector<4x256xf32> to vector<1x256xf32>
    %51 = vector.broadcast %49 : vector<4x1xf32> to vector<4x256xf32>
    %52 = vector.broadcast %50 : vector<1x256xf32> to vector<4x256xf32>
    %53 = arith.mulf %51, %52 : vector<4x256xf32>
    %54 = arith.addf %48, %53 : vector<4x256xf32>
    %55 = vector.extract_strided_slice %37 {offsets = [0, 3], sizes = [4, 1], strides = [1, 1]} : vector<4x4xf32> to vector<4x1xf32>
    %56 = vector.extract_strided_slice %35 {offsets = [3, 0], sizes = [1, 256], strides = [1, 1]} : vector<4x256xf32> to vector<1x256xf32>
    %57 = vector.broadcast %55 : vector<4x1xf32> to vector<4x256xf32>
    %58 = vector.broadcast %56 : vector<1x256xf32> to vector<4x256xf32>
    %59 = arith.mulf %57, %58 : vector<4x256xf32>
    %60 = arith.addf %54, %59 : vector<4x256xf32>
    %c1_16 = arith.constant 1 : index
    %c0_17 = arith.constant 0 : index
    %c0_18 = arith.constant 0 : index
    %61 = vector.load %arg4[%c1_16, %c0_17, %c0_18] : memref<2x4x1xf32, #tpu.memory_space<vmem>>, vector<1x4x1xf32>
    %62 = vector.shape_cast %61 : vector<1x4x1xf32> to vector<4x1xf32>
    %63 = vector.broadcast %62 : vector<4x1xf32> to vector<4x256xf32>
    %64 = arith.addf %60, %63 : vector<4x256xf32>
    %c1_19 = arith.constant 1 : index
    %c0_20 = arith.constant 0 : index
    %c0_21 = arith.constant 0 : index
    %65 = vector.load %arg5[%c1_19, %c0_20, %c0_21] : memref<2x4x256xf32, #tpu.memory_space<vmem>>, vector<1x4x256xf32>
    %66 = vector.shape_cast %65 : vector<1x4x256xf32> to vector<4x256xf32>
    %67 = vector.shape_cast %64 : vector<4x256xf32> to vector<1x4x256xf32>
    tpu.vector_store %arg5[%c1_19, %c0_20, %c0_21], %67 {strides = array<i32>} : memref<2x4x256xf32, #tpu.memory_space<vmem>>, vector<1x4x256xf32>,
    return
  }
  func.func @transform_0(%arg0: i32, %arg1: i32) -> (i32, i32, i32) {
    %c0_i32 = arith.constant 0 : i32
    %c0_i32_0 = arith.constant 0 : i32
    return %arg0, %c0_i32, %arg1 : i32, i32, i32
  }
  func.func @transform_1(%arg0: i32, %arg1: i32) -> (i32, i32, i32) {
    %c0_i32 = arith.constant 0 : i32
    %c0_i32_0 = arith.constant 0 : i32
    %c0_i32_1 = arith.constant 0 : i32
    return %arg0, %c0_i32, %c0_i32_0 : i32, i32, i32
  }
  func.func @transform_2(%arg0: i32, %arg1: i32) -> (i32, i32, i32) {
    %c0_i32 = arith.constant 0 : i32
    %c0_i32_0 = arith.constant 0 : i32
    %c0_i32_1 = arith.constant 0 : i32
    return %arg0, %c0_i32, %c0_i32_0 : i32, i32, i32
  }
  func.func @transform_3(%arg0: i32, %arg1: i32) -> (i32, i32, i32) {
    %c0_i32 = arith.constant 0 : i32
    %c0_i32_0 = arith.constant 0 : i32
    return %arg0, %c0_i32, %arg1 : i32, i32, i32
  }
}

</mosaic_0001>

<llo_original>
// kernel: tpu_custom_call.1
$region0: #{tpu_custom_call.1}
  #allocation0 [shape = 'u32[]', space=smem, size = 0x4, offset = 0x4, fixed_abs, tag = 'smem constant byte address 0x4 - core index']
  #allocation1 [shape = 'u32[144,128]{1,0:T(1,128)}', space=vmem, size = 0x12000, scoped, tag = 'internal scratch']
  %s0 = inlined_call_operand.hbm [shape: f32[2,4,256], index: 0, kind: input, shape index: {}]
  %s1 = inlined_call_operand.vmem [shape: f32[2,4,4], index: 1, kind: input, shape index: {}]
  %s2 = inlined_call_operand.vmem [shape: f32[2,4,1], index: 2, kind: input, shape index: {}]
  %s3 = inlined_call_operand.hbm [shape: f32[2,4,256], index: 3, kind: output, shape index: {}]
  %s4 = sld [smem:[#allocation0]]
  $region26: #{tpu_custom_call.1} parent=0
    _
  %s6 = ssub.s32 1, %s4
  %s7 = scalar_select 0, %s6, %s4
  $region1: #{tpu_custom_call.1} parent=0
    #allocation2 [shape = 'u8[8192]{0}', space=vmem, size = 0x2000, scoped, tag = 'input window, operand 0, single buffered']
    #allocation3 [shape = 's32[1]{0}', space=sflag, size = 0x4, scoped, tag = 'scoped memory for tpu_custom_call.1']
    #allocation4 [shape = 's32[1]{0}', space=sflag, size = 0x4, scoped, tag = 'scoped memory for tpu_custom_call.1']
    #allocation5 [shape = 'u8[8192]{0}', space=vmem, size = 0x2000, scoped, tag = 'output window, operand 0, single buffered']
    %8 = vsyncpa [#allocation3], 0
    %9 = vsyncpa [#allocation4], 0
    // Predicated region
    $region2: #{tpu_custom_call.1} parent=1 // pred_check
      _
    $region3: #{tpu_custom_call.1} parent=1 // pred_check_branch
      %11 = sbr.rel (0) target = $region5
    $region4: #{tpu_custom_call.1} parent=1 // pred_region
      %s13 = ssub.s32 256, 256
      %14 = vsyncadd [#allocation3], %s13
      %s15 = sshll.u32 [#allocation2], 4
      %s16 = int_to_ptr.vmem [resolvable:$true] %s15
      %21 = dma.hbm_to_vmem [thread:$0]  %s0, 256, %s16, [#allocation3], 128, 128, 8
    $region5: #{tpu_custom_call.1} parent=1 // pred_fallthru
      _
    // Predicated region
    $region6: #{tpu_custom_call.1} parent=1 // pred_check
      _
    $region7: #{tpu_custom_call.1} parent=1 // pred_check_branch
      %23 = sbr.rel (0) target = $region9
    $region8: #{tpu_custom_call.1} parent=1 // pred_region
      _
    $region9: #{tpu_custom_call.1} parent=1 // pred_fallthru
      _
    // Predicated region
    $region10: #{tpu_custom_call.1} parent=1 // pred_check
      _
    $region11: #{tpu_custom_call.1} parent=1 // pred_check_branch
      %25 = sbr.rel (0) target = $region13
    $region12: #{tpu_custom_call.1} parent=1 // pred_region
      _
    $region13: #{tpu_custom_call.1} parent=1 // pred_fallthru
      _
    // Predicated region
    $region14: #{tpu_custom_call.1} parent=1 // pred_check
      _
    $region15: #{tpu_custom_call.1} parent=1 // pred_check_branch
      %27 = sbr.rel (0) target = $region17
    $region16: #{tpu_custom_call.1} parent=1 // pred_region
      %28 = dma.done [#allocation3], 256
    $region17: #{tpu_custom_call.1} parent=1 // pred_fallthru
      _
    %v29 = vld [vmem:[#allocation2] sm:$0xff]
    %v30 = vld [vmem:[%s1] sm:$0xf]
    %32 = vset.pattern.permute.xlu0 0
    %33 = vperm.xlu0 %32, %v30
    %v34 = vpop.permute.xlu0 %33
    %v37 = vlaneseq
    %v38 = vshrl.u32 %v37, 7
    %v39 = vsub.s32 0, %v38
    %v40 = vrot.slane %v29, %v39
    %v41 = vlaneseq
    %v42 = vshrl.u32 %v41, 7
    %v43 = vsub.s32 4, %v42
    %v44 = vrot.slane %v29, %v43
    %v47 = vlaneseq
    %v48 = vshrl.u32 %v47, 7
    %v49 = vsub.s32 0, %v48
    %v50 = vrot.slane %v40, %v49
    %v51 = vlaneseq
    %v52 = vshrl.u32 %v51, 7
    %v53 = vsub.s32 0, %v52
    %v54 = vrot.slane %v44, %v53
    %v55 = vmul.f32 %v34, %v50
    %v56 = vmul.f32 %v34, %v54
    %57 = vset.pattern.permute.xlu0 1
    %58 = vperm.xlu0 %57, %v30
    %v59 = vpop.permute.xlu0 %58
    %v61 = vlaneseq
    %v62 = vshrl.u32 %v61, 7
    %v63 = vsub.s32 1, %v62
    %v64 = vrot.slane %v29, %v63
    %v65 = vlaneseq
    %v66 = vshrl.u32 %v65, 7
    %v67 = vsub.s32 5, %v66
    %v68 = vrot.slane %v29, %v67
    %v71 = vlaneseq
    %v72 = vshrl.u32 %v71, 7
    %v73 = vsub.s32 1, %v72
    %v74 = vrot.slane %v64, %v73
    %v75 = vlaneseq
    %v76 = vshrl.u32 %v75, 7
    %v77 = vsub.s32 1, %v76
    %v78 = vrot.slane %v68, %v77
    %v79 = vmul.f32 %v59, %v74
    %v80 = vmul.f32 %v59, %v78
    %v81 = vadd.f32 %v55, %v79
    %v82 = vadd.f32 %v56, %v80
    %83 = vset.pattern.permute.xlu0 2
    %84 = vperm.xlu0 %83, %v30
    %v85 = vpop.permute.xlu0 %84
    %v87 = vlaneseq
    %v88 = vshrl.u32 %v87, 7
    %v89 = vsub.s32 2, %v88
    %v90 = vrot.slane %v29, %v89
    %v91 = vlaneseq
    %v92 = vshrl.u32 %v91, 7
    %v93 = vsub.s32 6, %v92
    %v94 = vrot.slane %v29, %v93
    %v97 = vlaneseq
    %v98 = vshrl.u32 %v97, 7
    %v99 = vsub.s32 2, %v98
    %v100 = vrot.slane %v90, %v99
    %v101 = vlaneseq
    %v102 = vshrl.u32 %v101, 7
    %v103 = vsub.s32 2, %v102
    %v104 = vrot.slane %v94, %v103
    %v105 = vmul.f32 %v85, %v100
    %v106 = vmul.f32 %v85, %v104
    %v107 = vadd.f32 %v81, %v105
    %v108 = vadd.f32 %v82, %v106
    %109 = vset.pattern.permute.xlu0 3
    %110 = vperm.xlu0 %109, %v30
    %v111 = vpop.permute.xlu0 %110
    %v113 = vlaneseq
    %v114 = vshrl.u32 %v113, 7
    %v115 = vsub.s32 3, %v114
    %v116 = vrot.slane %v29, %v115
    %v117 = vlaneseq
    %v118 = vshrl.u32 %v117, 7
    %v119 = vsub.s32 7, %v118
    %v120 = vrot.slane %v29, %v119
    %v123 = vlaneseq
    %v124 = vshrl.u32 %v123, 7
    %v125 = vsub.s32 3, %v124
    %v126 = vrot.slane %v116, %v125
    %v127 = vlaneseq
    %v128 = vshrl.u32 %v127, 7
    %v129 = vsub.s32 3, %v128
    %v130 = vrot.slane %v120, %v129
    %v131 = vmul.f32 %v111, %v126
    %v132 = vmul.f32 %v111, %v130
    %v133 = vadd.f32 %v107, %v131
    %v134 = vadd.f32 %v108, %v132
    %v135 = vld [vmem:[%s2] sm:$0xf]
    %137 = vset.pattern.permute.xlu0 0
    %138 = vperm.xlu0 %137, %v135
    %v139 = vpop.permute.xlu0 %138
    %v141 = vadd.f32 %v133, %v139
    %v142 = vadd.f32 %v134, %v139
    %v145 = vcombine.low %v141, %v142
    %147 = vst [vmem:[#allocation5] sm:$0xff] %v145
    %s148 = scalar_lea.vmem [#allocation2], 8
    %v149 = vld [vmem:[%s148] sm:$0xff]
    %s150 = scalar_lea.vmem %s1, 4
    %v151 = vld [vmem:[%s150] sm:$0xf]
    %153 = vset.pattern.permute.xlu0 0
    %154 = vperm.xlu0 %153, %v151
    %v155 = vpop.permute.xlu0 %154
    %v158 = vlaneseq
    %v159 = vshrl.u32 %v158, 7
    %v160 = vsub.s32 0, %v159
    %v161 = vrot.slane %v149, %v160
    %v162 = vlaneseq
    %v163 = vshrl.u32 %v162, 7
    %v164 = vsub.s32 4, %v163
    %v165 = vrot.slane %v149, %v164
    %v168 = vlaneseq
    %v169 = vshrl.u32 %v168, 7
    %v170 = vsub.s32 0, %v169
    %v171 = vrot.slane %v161, %v170
    %v172 = vlaneseq
    %v173 = vshrl.u32 %v172, 7
    %v174 = vsub.s32 0, %v173
    %v175 = vrot.slane %v165, %v174
    %v176 = vmul.f32 %v155, %v171
    %v177 = vmul.f32 %v155, %v175
    %178 = vset.pattern.permute.xlu0 1
    %179 = vperm.xlu0 %178, %v151
    %v180 = vpop.permute.xlu0 %179
    %v182 = vlaneseq
    %v183 = vshrl.u32 %v182, 7
    %v184 = vsub.s32 1, %v183
    %v185 = vrot.slane %v149, %v184
    %v186 = vlaneseq
    %v187 = vshrl.u32 %v186, 7
    %v188 = vsub.s32 5, %v187
    %v189 = vrot.slane %v149, %v188
    %v192 = vlaneseq
    %v193 = vshrl.u32 %v192, 7
    %v194 = vsub.s32 1, %v193
    %v195 = vrot.slane %v185, %v194
    %v196 = vlaneseq
    %v197 = vshrl.u32 %v196, 7
    %v198 = vsub.s32 1, %v197
    %v199 = vrot.slane %v189, %v198
    %v200 = vmul.f32 %v180, %v195
    %v201 = vmul.f32 %v180, %v199
    %v202 = vadd.f32 %v176, %v200
    %v203 = vadd.f32 %v177, %v201
    %204 = vset.pattern.permute.xlu0 2
    %205 = vperm.xlu0 %204, %v151
    %v206 = vpop.permute.xlu0 %205
    %v208 = vlaneseq
    %v209 = vshrl.u32 %v208, 7
    %v210 = vsub.s32 2, %v209
    %v211 = vrot.slane %v149, %v210
    %v212 = vlaneseq
    %v213 = vshrl.u32 %v212, 7
    %v214 = vsub.s32 6, %v213
    %v215 = vrot.slane %v149, %v214
    %v218 = vlaneseq
    %v219 = vshrl.u32 %v218, 7
    %v220 = vsub.s32 2, %v219
    %v221 = vrot.slane %v211, %v220
    %v222 = vlaneseq
    %v223 = vshrl.u32 %v222, 7
    %v224 = vsub.s32 2, %v223
    %v225 = vrot.slane %v215, %v224
    %v226 = vmul.f32 %v206, %v221
    %v227 = vmul.f32 %v206, %v225
    %v228 = vadd.f32 %v202, %v226
    %v229 = vadd.f32 %v203, %v227
    %230 = vset.pattern.permute.xlu0 3
    %231 = vperm.xlu0 %230, %v151
    %v232 = vpop.permute.xlu0 %231
    %v234 = vlaneseq
    %v235 = vshrl.u32 %v234, 7
    %v236 = vsub.s32 3, %v235
    %v237 = vrot.slane %v149, %v236
    %v238 = vlaneseq
    %v239 = vshrl.u32 %v238, 7
    %v240 = vsub.s32 7, %v239
    %v241 = vrot.slane %v149, %v240
    %v244 = vlaneseq
    %v245 = vshrl.u32 %v244, 7
    %v246 = vsub.s32 3, %v245
    %v247 = vrot.slane %v237, %v246
    %v248 = vlaneseq
    %v249 = vshrl.u32 %v248, 7
    %v250 = vsub.s32 3, %v249
    %v251 = vrot.slane %v241, %v250
    %v252 = vmul.f32 %v232, %v247
    %v253 = vmul.f32 %v232, %v251
    %v254 = vadd.f32 %v228, %v252
    %v255 = vadd.f32 %v229, %v253
    %s256 = scalar_lea.vmem %s2, 4
    %v257 = vld [vmem:[%s256] sm:$0xf]
    %259 = vset.pattern.permute.xlu0 0
    %260 = vperm.xlu0 %259, %v257
    %v261 = vpop.permute.xlu0 %260
    %v263 = vadd.f32 %v254, %v261
    %v264 = vadd.f32 %v255, %v261
    %v267 = vcombine.low %v263, %v264
    %s269 = scalar_lea.vmem [#allocation5], 8
    %270 = vst [vmem:[%s269] sm:$0xff] %v267
    // Predicated region
    $region18: #{tpu_custom_call.1} parent=1 // pred_check
      _
    $region19: #{tpu_custom_call.1} parent=1 // pred_check_branch
      %272 = sbr.rel (0) target = $region21
    $region20: #{tpu_custom_call.1} parent=1 // pred_region
      %s274 = ssub.s32 256, 256
      %275 = vsyncadd [#allocation4], %s274
      %s276 = sshll.u32 [#allocation5], 4
      %s277 = int_to_ptr.vmem [resolvable:$true] %s276
      %282 = dma.vmem_to_hbm [thread:$0]  %s277, 256, %s3, [#allocation4], 128, 128, 8
    $region21: #{tpu_custom_call.1} parent=1 // pred_fallthru
      _
    // Predicated region
    $region22: #{tpu_custom_call.1} parent=1 // pred_check
      _
    $region23: #{tpu_custom_call.1} parent=1 // pred_check_branch
      %284 = sbr.rel (0) target = $region25
    $region24: #{tpu_custom_call.1} parent=1 // pred_region
      %285 = dma.done [#allocation4], 256
    $region25: #{tpu_custom_call.1} parent=1 // pred_fallthru
      _
    %286 = vsyncpa [#allocation3], 1
    %287 = vsyncpa [#allocation4], 1

</llo_original>
